<compile_context>
chip_gen: v6e
topology: v6e:2x2x1
jax: 0.10.0
libtpu: 0.0.40
codegen_flags: <defaults>
</compile_context>

<pallas_src>
import math
import functools

import jax
import jax.numpy as jnp
from jax.experimental import pallas as pl
from jax.experimental.pallas import tpu as pltpu

LN_EPS = 1e-5  # torch.nn.LayerNorm default


# ----------------------------- shared math helpers -----------------------------

def _gelu(x):
    # exact (erf-based) GELU, matching ACT2FN["gelu"] in the torch module
    return x * 0.5 * (1.0 + jax.lax.erf(x / math.sqrt(2.0)))


def _layernorm(x, gamma, beta, eps):
    mu = jnp.mean(x, axis=-1, keepdims=True)
    var = jnp.mean((x - mu) ** 2, axis=-1, keepdims=True)
    return (x - mu) * jax.lax.rsqrt(var + eps) * gamma + beta


# ------------------- primary kernel: resident weights, 1-D grid -------------------

def ffn_kernel_resident(x_ref, w1_ref, b1_ref, w2_ref, b2_ref, g_ref, beta_ref,
                        out_ref, *, eps):
    """grid = (num_row_tiles,).  Whole FFN for one row tile in a single step.

      x_ref  : (TM, H)  activations (original dtype; residual source)
      w1_ref : (H, I)   bf16 (resident, constant block index)
      b1_ref : (1, I)   f32
      w2_ref : (I, H)   bf16 (resident, constant block index)
      b2/g/beta : (1, H) f32
    """
    x = x_ref[...]
    h = jnp.dot(x.astype(jnp.bfloat16), w1_ref[...],
                preferred_element_type=jnp.float32) + b1_ref[...]
    h = _gelu(h)
    y = jnp.dot(h.astype(jnp.bfloat16), w2_ref[...],
                preferred_element_type=jnp.float32) + b2_ref[...]
    # dropout is identity at inference
    out_ref[...] = _layernorm(y + x.astype(jnp.float32), g_ref[...],
                              beta_ref[...], eps).astype(out_ref.dtype)


# --------------- fallback kernel: d_hid reduction axis (2-D grid) ----------------

def ffn_kernel_tiled(x_ref, w1_ref, b1_ref, w2_ref, b2_ref, g_ref, beta_ref,
                     out_ref, xbf_ref, acc_ref, *, eps):
    """grid = (num_row_tiles, num_inner_tiles); axis 1 is the d_hid reduction.

      xbf_ref : (TM, H) bf16 scratch (x cast once per row tile, reused per i step)
      acc_ref : (TM, H) f32 accumulator for h @ W2
    """
    i = pl.program_id(1)

    @pl.when(i == 0)
    def _init():
        xbf_ref[...] = x_ref[...].astype(jnp.bfloat16)
        acc_ref[...] = jnp.zeros_like(acc_ref)

    h = jnp.dot(xbf_ref[...], w1_ref[...],
                preferred_element_type=jnp.float32) + b1_ref[...]
    h = _gelu(h)
    acc_ref[...] += jnp.dot(h.astype(jnp.bfloat16), w2_ref[...],
                            preferred_element_type=jnp.float32)

    @pl.when(i == pl.num_programs(1) - 1)
    def _finalize():
        y = acc_ref[...] + b2_ref[...]
        out_ref[...] = _layernorm(y + x_ref[...].astype(jnp.float32),
                                  g_ref[...], beta_ref[...], eps).astype(out_ref.dtype)


# ----------------------------- wrapper-side plumbing -----------------------------

def _round_up(n, m):
    return ((n + m - 1) // m) * m


def _vmem_capacity_bytes():
    try:
        info = pltpu.get_tpu_info()
        cap = getattr(info, "vmem_capacity_bytes", None)
        if cap:
            return int(cap)
    except Exception:
        pass
    return 64 << 20  # conservative fallback (v7x per-TC size); <= physical everywhere


def _hw_vmem_limit():
    # ~75% of physical: ~48 MiB on v7x, ~96 MiB on v5e/v6e (well above scoped defaults).
    return int(_vmem_capacity_bytes() * 3 // 4)


def _resident_footprint(tm, h, inner, x_bytes, out_bytes):
    weights = 2 * 2 * (2 * h * inner)                 # W1+W2 bf16, x2 buffering
    tiles = 2 * tm * h * (x_bytes + out_bytes)        # double-buffered x / out tiles
    temps = 4 * tm * inner + 8 * 4 * tm * h + 2 * tm * h  # h f32, LN temps, bf16 casts
    small = 4 * (inner + 3 * h) * 4
    return weights + tiles + temps + small


def _tiled_footprint(tm, ti, h, inner, x_bytes, out_bytes):
    weights = 2 * 2 * (2 * h * ti)                    # W1/W2 column/row tiles, bf16, x2
    tiles = 2 * tm * h * (x_bytes + out_bytes)
    scratch = tm * h * (2 + 4)                        # bf16 x scratch + f32 accumulator
    temps = 4 * tm * ti + 6 * 4 * tm * h
    small = 4 * (inner + 3 * h) * 4
    return weights + tiles + scratch + temps + small


def _pick_tm(m_total, want):
    tm = max(8, min((want // 8) * 8, _round_up(m_total, 8)))
    # keep >= 2 row tiles whenever there is enough work (v7x: 2 TCs per chip)
    if m_total > 8 and pl.cdiv(m_total, tm) < 2:
        tm = max(8, _round_up(pl.cdiv(m_total, 2), 8))
    return tm


def _pick_ti(inner, budget, tm, h, x_bytes, out_bytes):
    if inner % 128 != 0:
        return inner                                   # unaligned small dim: take whole
    step = 256 if inner % 256 == 0 else 128            # 256-granular matches v6e/v7x MXU
    candidates = [t for t in range(step, inner + 1, step) if inner % t == 0]
    for t in sorted(candidates, reverse=True):         # largest tile that fits budget
        if _tiled_footprint(tm, t, h, inner, x_bytes, out_bytes) <= budget:
            return t
    return candidates[0]


def prepare_ffn_params(params):
    """One-time (model-load) conversion to kernel layout: bf16 weights, (1,N) f32 params."""
    d_in, d_hid = params["w1"].shape
    return {
        "w1": params["w1"].astype(jnp.bfloat16),                      # (d_in, d_hid)
        "w2": params["w2"].astype(jnp.bfloat16),                      # (d_hid, d_in)
        "b1": params["b1"].reshape(1, d_hid).astype(jnp.float32),
        "b2": params["b2"].reshape(1, d_in).astype(jnp.float32),
        "ln_g": params["ln_g"].reshape(1, d_in).astype(jnp.float32),
        "ln_b": params["ln_b"].reshape(1, d_in).astype(jnp.float32),
    }


def positionwise_feed_forward(x, prepared, *, tm=512, eps=LN_EPS,
                              vmem_budget_bytes=None):
    """x: (B, S, d_in).  `prepared` comes from prepare_ffn_params (bf16 W, (1,N) f32 b)."""
    B, S, H = x.shape
    I = prepared["w1"].shape[1]
    M = B * S

    x2 = x.reshape(M, H)                       # no host-side pad; ragged last block is OK
    x_bytes = x.dtype.itemsize
    out_bytes = x.dtype.itemsize

    vmem_limit = _hw_vmem_limit()
    budget = vmem_budget_bytes if vmem_budget_bytes is not None else vmem_limit

    tm = _pick_tm(M, tm)

    # Can W1 + W2 stay VMEM-resident at some row-tile size?
    tm_res = tm
    while tm_res > 8 and _resident_footprint(tm_res, H, I, x_bytes, out_bytes) > budget:
        tm_res = max(8, _round_up(tm_res // 2, 8))
    resident = _resident_footprint(tm_res, H, I, x_bytes, out_bytes) <= budget

    w1, w2 = prepared["w1"], prepared["w2"]
    b1, b2 = prepared["b1"], prepared["b2"]
    g, bt = prepared["ln_g"], prepared["ln_b"]

    if resident:
        tm = tm_res
        out = pl.pallas_call(
            functools.partial(ffn_kernel_resident, eps=eps),
            grid=(pl.cdiv(M, tm),),
            in_specs=[
                pl.BlockSpec((tm, H), lambda m: (m, 0)),   # x row tile
                pl.BlockSpec((H, I), lambda m: (0, 0)),    # W1 (resident)
                pl.BlockSpec((1, I), lambda m: (0, 0)),    # b1
                pl.BlockSpec((I, H), lambda m: (0, 0)),    # W2 (resident)
                pl.BlockSpec((1, H), lambda m: (0, 0)),    # b2
                pl.BlockSpec((1, H), lambda m: (0, 0)),    # LN gamma
                pl.BlockSpec((1, H), lambda m: (0, 0)),    # LN beta
            ],
            out_specs=pl.BlockSpec((tm, H), lambda m: (m, 0)),
            out_shape=jax.ShapeDtypeStruct((M, H), x.dtype),
            compiler_params=pltpu.CompilerParams(
                dimension_semantics=("parallel",),
                vmem_limit_bytes=vmem_limit),
        )(x2, w1, b1, w2, b2, g, bt)
    else:
        # Fallback: tile the d_hid reduction (weights too large to keep resident).
        ti = _pick_ti(I, budget, tm, H, x_bytes, out_bytes)
        out = pl.pallas_call(
            functools.partial(ffn_kernel_tiled, eps=eps),
            grid=(pl.cdiv(M, tm), I // ti),
            in_specs=[
                pl.BlockSpec((tm, H), lambda m, i: (m, 0)),   # x rows (resident over i)
                pl.BlockSpec((H, ti), lambda m, i: (0, i)),   # W1 column tile
                pl.BlockSpec((1, ti), lambda m, i: (0, i)),   # b1 tile
                pl.BlockSpec((ti, H), lambda m, i: (i, 0)),   # W2 row tile
                pl.BlockSpec((1, H), lambda m, i: (0, 0)),    # b2
                pl.BlockSpec((1, H), lambda m, i: (0, 0)),    # LN gamma
                pl.BlockSpec((1, H), lambda m, i: (0, 0)),    # LN beta
            ],
            out_specs=pl.BlockSpec((tm, H), lambda m, i: (m, 0)),
            out_shape=jax.ShapeDtypeStruct((M, H), x.dtype),
            scratch_shapes=[pltpu.VMEM((tm, H), jnp.bfloat16),   # hoisted x->bf16 cast
                            pltpu.VMEM((tm, H), jnp.float32)],   # f32 accumulator
            compiler_params=pltpu.CompilerParams(
                dimension_semantics=("parallel", "arbitrary"),
                vmem_limit_bytes=vmem_limit),
        )(x2, w1, b1, w2, b2, g, bt)

    return out.reshape(B, S, H)


# ------------------------------- pure-JAX references -----------------------------

def _ref_ffn_f32(x, p, eps=LN_EPS):
    h = _gelu(x @ p["w1"] + p["b1"])
    y = h @ p["w2"] + p["b2"]
    return _layernorm(y + x, p["ln_g"], p["ln_b"], eps)


def _ref_ffn_bf16(x, p, eps=LN_EPS):
    """Mirrors the kernel's bf16-matmul / f32-accumulate numerics."""
    bf = jnp.bfloat16
    h = jnp.dot(x.astype(bf), p["w1"].astype(bf),
                preferred_element_type=jnp.float32) + p["b1"]
    h = _gelu(h)
    y = jnp.dot(h.astype(bf), p["w2"].astype(bf),
                preferred_element_type=jnp.float32) + p["b2"]
    return _layernorm(y + x.astype(jnp.float32), p["ln_g"], p["ln_b"], eps)


# -------------------------------------- main --------------------------------------

if __name__ == "__main__":
    D_IN, D_HID = 256, 512

    root = jax.random.PRNGKey(0)
    kx, kw1, kb1, kw2, kb2, kx2 = jax.random.split(root, 6)

    params = {
        # Conv1d(d_in, d_hid, 1) weight (d_hid, d_in, 1) stored pre-transposed (d_in, d_hid).
        "w1": 0.02 * jax.random.normal(kw1, (D_IN, D_HID), jnp.float32),
        "b1": 0.02 * jax.random.normal(kb1, (D_HID,), jnp.float32),
        "w2": 0.02 * jax.random.normal(kw2, (D_HID, D_IN), jnp.float32),
        "b2": 0.02 * jax.random.normal(kb2, (D_IN,), jnp.float32),
        "ln_g": jnp.ones((D_IN,), jnp.float32),
        "ln_b": jnp.zeros((D_IN,), jnp.float32),
    }
    prepared = prepare_ffn_params(params)   # one-time bf16/layout conversion

    def check(out, x):
        assert out.shape == x.shape
        assert jnp.allclose(out, _ref_ffn_bf16(x, params), rtol=1e-3, atol=1e-3)
        assert jnp.allclose(out, _ref_ffn_f32(x, params), rtol=2e-2, atol=2e-2)

    # (a) primary resident-weight path, 2 row tiles.
    x = jax.random.normal(kx, (2, 8, D_IN), jnp.float32)
    out_res = jax.block_until_ready(positionwise_feed_forward(x, prepared))
    check(out_res, x)

    # (b) forced fallback path (tiny VMEM budget -> d_hid reduction axis + accumulator).
    out_tiled = jax.block_until_ready(
        positionwise_feed_forward(x, prepared, vmem_budget_bytes=1 << 20))
    check(out_tiled, x)

    # (c) ragged row count (B*S not a multiple of the row tile; no host-side pad/slice).
    x_rag = jax.random.normal(kx2, (2, 9, D_IN), jnp.float32)
    out_rag = jax.block_until_ready(positionwise_feed_forward(x_rag, prepared))
    check(out_rag, x_rag)

    print("KERNEL_OK")
</pallas_src>

<mosaic_0001>
module attributes {stable_mosaic.version = 11 : i64} {
  func.func @ffn_kernel_resident(%arg0: i32, %arg1: memref<8x256xf32, #tpu.memory_space<vmem>>, %arg2: memref<256x512xbf16, #tpu.memory_space<vmem>>, %arg3: memref<1x512xf32, #tpu.memory_space<vmem>>, %arg4: memref<512x256xbf16, #tpu.memory_space<vmem>>, %arg5: memref<1x256xf32, #tpu.memory_space<vmem>>, %arg6: memref<1x256xf32, #tpu.memory_space<vmem>>, %arg7: memref<1x256xf32, #tpu.memory_space<vmem>>, %arg8: memref<8x256xf32, #tpu.memory_space<vmem>>) attributes {dimension_semantics = [#tpu.dimension_semantics<parallel>], iteration_bounds = array<i64: 2>, scalar_prefetch = 0 : i64, scratch_operands = 0 : i64, tpu.core_type = #tpu.core_type<tc>, window_params = [{transform_indices = @transform_0, window_bounds = array<i64: 8, 256>}, {pipeline_mode = #tpu.pipeline_mode<synchronous>, transform_indices = @transform_1, window_bounds = array<i64: 256, 512>}, {pipeline_mode = #tpu.pipeline_mode<synchronous>, transform_indices = @transform_2, window_bounds = array<i64: 1, 512>}, {pipeline_mode = #tpu.pipeline_mode<synchronous>, transform_indices = @transform_3, window_bounds = array<i64: 512, 256>}, {pipeline_mode = #tpu.pipeline_mode<synchronous>, transform_indices = @transform_4, window_bounds = array<i64: 1, 256>}, {pipeline_mode = #tpu.pipeline_mode<synchronous>, transform_indices = @transform_5, window_bounds = array<i64: 1, 256>}, {pipeline_mode = #tpu.pipeline_mode<synchronous>, transform_indices = @transform_6, window_bounds = array<i64: 1, 256>}, {transform_indices = @transform_7, window_bounds = array<i64: 8, 256>}]} {
    %c0 = arith.constant 0 : index
    %c0_0 = arith.constant 0 : index
    %0 = vector.load %arg1[%c0, %c0_0] : memref<8x256xf32, #tpu.memory_space<vmem>>, vector<8x256xf32>
    %1 = arith.truncf %0 : vector<8x256xf32> to vector<8x256xbf16>
    %c0_1 = arith.constant 0 : index
    %c0_2 = arith.constant 0 : index
    %2 = vector.load %arg2[%c0_1, %c0_2] : memref<256x512xbf16, #tpu.memory_space<vmem>>, vector<256x512xbf16>
    %cst = arith.constant dense<0.000000e+00> : vector<8x512xf32>
    %3 = tpu.matmul %1, %2, %cst {dimension_numbers = #tpu.dot_dimension_numbers<[1], [0], [0], [1], [0, 0, 1, 1], [], []>} : vector<8x256xbf16>, vector<256x512xbf16>, vector<8x512xf32> -> vector<8x512xf32>
    %c0_3 = arith.constant 0 : index
    %c0_4 = arith.constant 0 : index
    %4 = vector.load %arg3[%c0_3, %c0_4] : memref<1x512xf32, #tpu.memory_space<vmem>>, vector<1x512xf32>
    %5 = vector.broadcast %4 : vector<1x512xf32> to vector<8x512xf32>
    %6 = arith.addf %3, %5 : vector<8x512xf32>
    %cst_5 = arith.constant 5.000000e-01 : f32
    %7 = vector.broadcast %cst_5 : f32 to vector<8x512xf32>
    %8 = arith.mulf %6, %7 : vector<8x512xf32>
    %cst_6 = arith.constant 1.41421354 : f32
    %9 = vector.broadcast %cst_6 : f32 to vector<8x512xf32>
    %10 = arith.divf %6, %9 : vector<8x512xf32>
    %11 = math.erf %10 : vector<8x512xf32>
    %cst_7 = arith.constant 1.000000e+00 : f32
    %12 = vector.broadcast %cst_7 : f32 to vector<8x512xf32>
    %13 = arith.addf %12, %11 : vector<8x512xf32>
    %14 = arith.mulf %8, %13 : vector<8x512xf32>
    %15 = arith.truncf %14 : vector<8x512xf32> to vector<8x512xbf16>
    %c0_8 = arith.constant 0 : index
    %c0_9 = arith.constant 0 : index
    %16 = vector.load %arg4[%c0_8, %c0_9] : memref<512x256xbf16, #tpu.memory_space<vmem>>, vector<512x256xbf16>
    %cst_10 = arith.constant dense<0.000000e+00> : vector<8x256xf32>
    %17 = tpu.matmul %15, %16, %cst_10 {dimension_numbers = #tpu.dot_dimension_numbers<[1], [0], [0], [1], [0, 0, 1, 1], [], []>} : vector<8x512xbf16>, vector<512x256xbf16>, vector<8x256xf32> -> vector<8x256xf32>
    %c0_11 = arith.constant 0 : index
    %c0_12 = arith.constant 0 : index
    %18 = vector.load %arg5[%c0_11, %c0_12] : memref<1x256xf32, #tpu.memory_space<vmem>>, vector<1x256xf32>
    %19 = vector.broadcast %18 : vector<1x256xf32> to vector<8x256xf32>
    %20 = arith.addf %17, %19 : vector<8x256xf32>
    %21 = arith.addf %20, %0 : vector<8x256xf32>
    %c0_13 = arith.constant 0 : index
    %c0_14 = arith.constant 0 : index
    %22 = vector.load %arg6[%c0_13, %c0_14] : memref<1x256xf32, #tpu.memory_space<vmem>>, vector<1x256xf32>
    %c0_15 = arith.constant 0 : index
    %c0_16 = arith.constant 0 : index
    %23 = vector.load %arg7[%c0_15, %c0_16] : memref<1x256xf32, #tpu.memory_space<vmem>>, vector<1x256xf32>
    %cst_17 = arith.constant dense<0.000000e+00> : vector<8xf32>
    %24 = vector.multi_reduction <add>, %21, %cst_17 [1] : vector<8x256xf32> to vector<8xf32>
    %25 = vector.shape_cast %24 : vector<8xf32> to vector<8x1xf32>
    %cst_18 = arith.constant 2.560000e+02 : f32
    %26 = vector.broadcast %cst_18 : f32 to vector<8x1xf32>
    %27 = arith.divf %25, %26 : vector<8x1xf32>
    %28 = vector.broadcast %27 : vector<8x1xf32> to vector<8x256xf32>
    %29 = arith.subf %21, %28 : vector<8x256xf32>
    %30 = arith.mulf %29, %29 : vector<8x256xf32>
    %cst_19 = arith.constant dense<0.000000e+00> : vector<8xf32>
    %31 = vector.multi_reduction <add>, %30, %cst_19 [1] : vector<8x256xf32> to vector<8xf32>
    %32 = vector.shape_cast %31 : vector<8xf32> to vector<8x1xf32>
    %cst_20 = arith.constant 2.560000e+02 : f32
    %33 = vector.broadcast %cst_20 : f32 to vector<8x1xf32>
    %34 = arith.divf %32, %33 : vector<8x1xf32>
    %35 = vector.broadcast %27 : vector<8x1xf32> to vector<8x256xf32>
    %36 = arith.subf %21, %35 : vector<8x256xf32>
    %cst_21 = arith.constant 9.99999974E-6 : f32
    %37 = vector.broadcast %cst_21 : f32 to vector<8x1xf32>
    %38 = arith.addf %34, %37 : vector<8x1xf32>
    %39 = math.rsqrt %38 : vector<8x1xf32>
    %40 = vector.broadcast %39 : vector<8x1xf32> to vector<8x256xf32>
    %41 = arith.mulf %36, %40 : vector<8x256xf32>
    %42 = vector.broadcast %22 : vector<1x256xf32> to vector<8x256xf32>
    %43 = arith.mulf %41, %42 : vector<8x256xf32>
    %44 = vector.broadcast %23 : vector<1x256xf32> to vector<8x256xf32>
    %45 = arith.addf %43, %44 : vector<8x256xf32>
    %c0_22 = arith.constant 0 : index
    %c0_23 = arith.constant 0 : index
    %46 = vector.load %arg8[%c0_22, %c0_23] : memref<8x256xf32, #tpu.memory_space<vmem>>, vector<8x256xf32>
    tpu.vector_store %arg8[%c0_22, %c0_23], %45 {strides = array<i32>} : memref<8x256xf32, #tpu.memory_space<vmem>>, vector<8x256xf32>,
    return
  }
  func.func @transform_0(%arg0: i32) -> (i32, i32) {
    %c0_i32 = arith.constant 0 : i32
    %c0_i32_0 = arith.constant 0 : i32
    return %arg0, %c0_i32 : i32, i32
  }
  func.func @transform_1(%arg0: i32) -> (i32, i32) {
    %c0_i32 = arith.constant 0 : i32
    %c0_i32_0 = arith.constant 0 : i32
    %c0_i32_1 = arith.constant 0 : i32
    return %c0_i32, %c0_i32_0 : i32, i32
  }
  func.func @transform_2(%arg0: i32) -> (i32, i32) {
    %c0_i32 = arith.constant 0 : i32
    %c0_i32_0 = arith.constant 0 : i32
    %c0_i32_1 = arith.constant 0 : i32
    return %c0_i32, %c0_i32_0 : i32, i32
  }
  func.func @transform_3(%arg0: i32) -> (i32, i32) {
    %c0_i32 = arith.constant 0 : i32
    %c0_i32_0 = arith.constant 0 : i32
    %c0_i32_1 = arith.constant 0 : i32
    return %c0_i32, %c0_i32_0 : i32, i32
  }
  func.func @transform_4(%arg0: i32) -> (i32, i32) {
    %c0_i32 = arith.constant 0 : i32
    %c0_i32_0 = arith.constant 0 : i32
    %c0_i32_1 = arith.constant 0 : i32
    return %c0_i32, %c0_i32_0 : i32, i32
  }
  func.func @transform_5(%arg0: i32) -> (i32, i32) {
    %c0_i32 = arith.constant 0 : i32
    %c0_i32_0 = arith.constant 0 : i32
    %c0_i32_1 = arith.constant 0 : i32
    return %c0_i32, %c0_i32_0 : i32, i32
  }
  func.func @transform_6(%arg0: i32) -> (i32, i32) {
    %c0_i32 = arith.constant 0 : i32
    %c0_i32_0 = arith.constant 0 : i32
    %c0_i32_1 = arith.constant 0 : i32
    return %c0_i32, %c0_i32_0 : i32, i32
  }
  func.func @transform_7(%arg0: i32) -> (i32, i32) {
    %c0_i32 = arith.constant 0 : i32
    %c0_i32_0 = arith.constant 0 : i32
    return %arg0, %c0_i32 : i32, i32
  }
}

</mosaic_0001>

<llo_original>
// kernel: tpu_custom_call.1
$region0: #{tpu_custom_call.1}
  #allocation0 [shape = 'u32[]', space=smem, size = 0x4, offset = 0x4, fixed_abs, tag = 'smem constant byte address 0x4 - core index']
  #allocation1 [shape = 'u32[144,128]{1,0:T(1,128)}', space=vmem, size = 0x12000, scoped, tag = 'internal scratch']
  %s0 = inlined_call_operand.hbm [shape: f32[16,256], index: 0, kind: input, shape index: {}]
  %s1 = inlined_call_operand.hbm [shape: bf16[256,512], index: 1, kind: input, shape index: {}]
  %s2 = inlined_call_operand.hbm [shape: f32[1,512], index: 2, kind: input, shape index: {}]
  %s3 = inlined_call_operand.hbm [shape: bf16[512,256], index: 3, kind: input, shape index: {}]
  %s4 = inlined_call_operand.vmem [shape: f32[1,256], index: 4, kind: input, shape index: {}]
  %s5 = inlined_call_operand.vmem [shape: f32[1,256], index: 5, kind: input, shape index: {}]
  %s6 = inlined_call_operand.vmem [shape: f32[1,256], index: 6, kind: input, shape index: {}]
  %s7 = inlined_call_operand.hbm [shape: f32[16,256], index: 7, kind: output, shape index: {}]
  %s8 = sld [smem:[#allocation0]]
  $region77: #{tpu_custom_call.1} parent=0
    _
  %s10 = ssub.s32 1, %s8
  %s11 = scalar_select 0, %s10, %s8
  $region1: #{tpu_custom_call.1} parent=0
    #allocation2 [shape = 'u8[16384]{0}', space=vmem, size = 0x4000, scoped, tag = 'input window, operand 0']
    #allocation3 [shape = 's32[2]{0}', space=sflag, size = 0x8, scoped, tag = 'scoped memory for tpu_custom_call.1']
    #allocation4 [shape = 's32[2]{0}', space=sflag, size = 0x8, scoped, tag = 'scoped memory for tpu_custom_call.1']
    #allocation5 [shape = 'u8[262144]{0}', space=vmem, size = 0x40000, scoped, tag = 'input window, operand 1, single buffered']
    #allocation6 [shape = 's32[1]{0}', space=sflag, size = 0x4, scoped, tag = 'scoped memory for tpu_custom_call.1']
    #allocation7 [shape = 'u8[2048]{0}', space=vmem, size = 0x800, scoped, tag = 'input window, operand 2, single buffered']
    #allocation8 [shape = 'u8[262144]{0}', space=vmem, size = 0x40000, scoped, tag = 'input window, operand 3, single buffered']
    #allocation9 [shape = 's32[1]{0}', space=sflag, size = 0x4, scoped, tag = 'scoped memory for tpu_custom_call.1']
    #allocation10 [shape = 'u8[16384]{0}', space=vmem, size = 0x4000, scoped, tag = 'output window, operand 0']
    %12 = vsyncpa [#allocation3], 0
    %s13 = scalar_lea.sflag [#allocation3], 1
    %14 = vsyncpa %s13, 0
    %15 = vsyncpa [#allocation6], 0
    %16 = vsyncpa [#allocation9], 0
    %17 = vsyncpa [#allocation4], 0
    %s18 = scalar_lea.sflag [#allocation4], 1
    %19 = vsyncpa %s18, 0
    loop: start=0, step=1, limit=4
    $region2: #{tpu_custom_call.1} parent=1 // loop_pre_header
      _
    $region3: #{tpu_custom_call.1} parent=1 // loop_header
      %s21 = sphi 0, %s25
      %p22 = scmp.ge.s32.totalorder %s21, 4
      %s31 = sphi 0, %s33
      %s34 = sphi 0, %s31
      %s35 = sphi 0, %s34
      %s51 = sphi 0, %s35
      %s55 = sphi 0, %s55
      %s57 = sphi 0, %s55
      %s58 = sphi 0, %s57
      %s72 = sphi 0, %s58
      %s76 = sphi 0, %s76
      %s78 = sphi 0, %s76
      %s79 = sphi 0, %s78
      %s93 = sphi 0, %s79
      %s97 = sphi 0, %s97
      %s99 = sphi 0, %s97
      %s100 = sphi 0, %s99
      %s114 = sphi 0, %s100
      %s118 = sphi 0, %s118
      %s120 = sphi 0, %s118
      %s121 = sphi 0, %s120
      %s135 = sphi 0, %s121
      %s139 = sphi 0, %s139
      %s141 = sphi 0, %s139
      %s142 = sphi 0, %s141
      %s156 = sphi 0, %s142
      %s160 = sphi 0, %s160
      %s162 = sphi 0, %s160
      %s163 = sphi 0, %s162
      %s177 = sphi 0, %s163
      %s183 = sphi 0, %s185
      %s186 = sphi 0, %s183
      %s187 = sphi 0, %s186
      %s203 = sphi 0, %s187
    $region4: #{tpu_custom_call.1} parent=1 // loop_header_branch
      %24 = sbr.rel (%p22) target = $region8
    $region5: #{tpu_custom_call.1} parent=1 // loop_body
      %s26 = ssub.s32 %s21, 1
      %s27 = ssub.s32 %s21, 2
      %s28 = sadd.s32 %s21, 1
      %s29 = ssub.s32 %s21, %s28
      %p30 = scmp.eq.s32.totalorder %s29, 0
      %s32 = sadd.s32 %s31, 1
      %s33 = scalar_select %p30, %s31, %s32
      %p36 = pneg %p30
      %p37 = scmp.eq.s32.totalorder %s21, 1
      %p38 = por %p36, %p37
      %p39 = scmp.ne.s32.totalorder %s31, %s34
      %p40 = scmp.eq.s32.totalorder %s21, 0
      %p41 = por %p39, %p40
      %p42 = scmp.ne.s32.totalorder %s31, %s34
      %p43 = scmp.eq.s32.totalorder %s26, 1
      %p44 = por %p42, %p43
      %p45 = scmp.ne.s32.totalorder %s34, %s35
      %p46 = scmp.eq.s32.totalorder %s26, 0
      %p47 = por %p45, %p46
      %p48 = scmp.ne.s32.totalorder %s34, %s35
      %p49 = scmp.eq.s32.totalorder %s27, 1
      %p50 = por %p48, %p49
      %p52 = scmp.ne.s32.totalorder %s35, %s51
      %p53 = scmp.eq.s32.totalorder %s27, 0
      %p54 = por %p52, %p53
      %s56 = sadd.s32 %s55, 1
      %p59 = scmp.eq.s32.totalorder %s21, 1
      %p60 = scmp.ne.s32.totalorder %s55, %s57
      %p61 = scmp.eq.s32.totalorder %s21, 0
      %p62 = por %p60, %p61
      %p63 = scmp.ne.s32.totalorder %s55, %s57
      %p64 = scmp.eq.s32.totalorder %s26, 1
      %p65 = por %p63, %p64
      %p66 = scmp.ne.s32.totalorder %s57, %s58
      %p67 = scmp.eq.s32.totalorder %s26, 0
      %p68 = por %p66, %p67
      %p69 = scmp.ne.s32.totalorder %s57, %s58
      %p70 = scmp.eq.s32.totalorder %s27, 1
      %p71 = por %p69, %p70
      %p73 = scmp.ne.s32.totalorder %s58, %s72
      %p74 = scmp.eq.s32.totalorder %s27, 0
      %p75 = por %p73, %p74
      %s77 = sadd.s32 %s76, 1
      %p80 = scmp.eq.s32.totalorder %s21, 1
      %p81 = scmp.ne.s32.totalorder %s76, %s78
      %p82 = scmp.eq.s32.totalorder %s21, 0
      %p83 = por %p81, %p82
      %p84 = scmp.ne.s32.totalorder %s76, %s78
      %p85 = scmp.eq.s32.totalorder %s26, 1
      %p86 = por %p84, %p85
      %p87 = scmp.ne.s32.totalorder %s78, %s79
      %p88 = scmp.eq.s32.totalorder %s26, 0
      %p89 = por %p87, %p88
      %p90 = scmp.ne.s32.totalorder %s78, %s79
      %p91 = scmp.eq.s32.totalorder %s27, 1
      %p92 = por %p90, %p91
      %p94 = scmp.ne.s32.totalorder %s79, %s93
      %p95 = scmp.eq.s32.totalorder %s27, 0
      %p96 = por %p94, %p95
      %s98 = sadd.s32 %s97, 1
      %p101 = scmp.eq.s32.totalorder %s21, 1
      %p102 = scmp.ne.s32.totalorder %s97, %s99
      %p103 = scmp.eq.s32.totalorder %s21, 0
      %p104 = por %p102, %p103
      %p105 = scmp.ne.s32.totalorder %s97, %s99
      %p106 = scmp.eq.s32.totalorder %s26, 1
      %p107 = por %p105, %p106
      %p108 = scmp.ne.s32.totalorder %s99, %s100
      %p109 = scmp.eq.s32.totalorder %s26, 0
      %p110 = por %p108, %p109
      %p111 = scmp.ne.s32.totalorder %s99, %s100
      %p112 = scmp.eq.s32.totalorder %s27, 1
      %p113 = por %p111, %p112
      %p115 = scmp.ne.s32.totalorder %s100, %s114
      %p116 = scmp.eq.s32.totalorder %s27, 0
      %p117 = por %p115, %p116
      %s119 = sadd.s32 %s118, 1
      %p122 = scmp.eq.s32.totalorder %s21, 1
      %p123 = scmp.ne.s32.totalorder %s118, %s120
      %p124 = scmp.eq.s32.totalorder %s21, 0
      %p125 = por %p123, %p124
      %p126 = scmp.ne.s32.totalorder %s118, %s120
      %p127 = scmp.eq.s32.totalorder %s26, 1
      %p128 = por %p126, %p127
      %p129 = scmp.ne.s32.totalorder %s120, %s121
      %p130 = scmp.eq.s32.totalorder %s26, 0
      %p131 = por %p129, %p130
      %p132 = scmp.ne.s32.totalorder %s120, %s121
      %p133 = scmp.eq.s32.totalorder %s27, 1
      %p134 = por %p132, %p133
      %p136 = scmp.ne.s32.totalorder %s121, %s135
      %p137 = scmp.eq.s32.totalorder %s27, 0
      %p138 = por %p136, %p137
      %s140 = sadd.s32 %s139, 1
      %p143 = scmp.eq.s32.totalorder %s21, 1
      %p144 = scmp.ne.s32.totalorder %s139, %s141
      %p145 = scmp.eq.s32.totalorder %s21, 0
      %p146 = por %p144, %p145
      %p147 = scmp.ne.s32.totalorder %s139, %s141
      %p148 = scmp.eq.s32.totalorder %s26, 1
      %p149 = por %p147, %p148
      %p150 = scmp.ne.s32.totalorder %s141, %s142
      %p151 = scmp.eq.s32.totalorder %s26, 0
      %p152 = por %p150, %p151
      %p153 = scmp.ne.s32.totalorder %s141, %s142
      %p154 = scmp.eq.s32.totalorder %s27, 1
      %p155 = por %p153, %p154
      %p157 = scmp.ne.s32.totalorder %s142, %s156
      %p158 = scmp.eq.s32.totalorder %s27, 0
      %p159 = por %p157, %p158
      %s161 = sadd.s32 %s160, 1
      %p164 = scmp.eq.s32.totalorder %s21, 1
      %p165 = scmp.ne.s32.totalorder %s160, %s162
      %p166 = scmp.eq.s32.totalorder %s21, 0
      %p167 = por %p165, %p166
      %p168 = scmp.ne.s32.totalorder %s160, %s162
      %p169 = scmp.eq.s32.totalorder %s26, 1
      %p170 = por %p168, %p169
      %p171 = scmp.ne.s32.totalorder %s162, %s163
      %p172 = scmp.eq.s32.totalorder %s26, 0
      %p173 = por %p171, %p172
      %p174 = scmp.ne.s32.totalorder %s162, %s163
      %p175 = scmp.eq.s32.totalorder %s27, 1
      %p176 = por %p174, %p175
      %p178 = scmp.ne.s32.totalorder %s163, %s177
      %p179 = scmp.eq.s32.totalorder %s27, 0
      %p180 = por %p178, %p179
      %s181 = ssub.s32 %s21, %s28
      %p182 = scmp.eq.s32.totalorder %s181, 0
      %s184 = sadd.s32 %s183, 1
      %s185 = scalar_select %p182, %s183, %s184
      %p188 = pneg %p182
      %p189 = scmp.eq.s32.totalorder %s21, 1
      %p190 = por %p188, %p189
      %p191 = scmp.ne.s32.totalorder %s183, %s186
      %p192 = scmp.eq.s32.totalorder %s21, 0
      %p193 = por %p191, %p192
      %p194 = scmp.ne.s32.totalorder %s183, %s186
      %p195 = scmp.eq.s32.totalorder %s26, 1
      %p196 = por %p194, %p195
      %p197 = scmp.ne.s32.totalorder %s186, %s187
      %p198 = scmp.eq.s32.totalorder %s26, 0
      %p199 = por %p197, %p198
      %p200 = scmp.ne.s32.totalorder %s186, %s187
      %p201 = scmp.eq.s32.totalorder %s27, 1
      %p202 = por %p200, %p201
      %p204 = scmp.ne.s32.totalorder %s187, %s203
      %p205 = scmp.eq.s32.totalorder %s27, 0
      %p206 = por %p204, %p205
      %p207 = scmp.le.s32.totalorder 1, %s21
      %p208 = scmp.lt.s32.totalorder %s21, 3
      %p209 = pnand %p207, %p208
      %p210 = pneg %p209
      // Predicated region
      $region9: #{tpu_custom_call.1} parent=5 // pred_check
        _
      $region10: #{tpu_custom_call.1} parent=5 // pred_check_branch
        %212 = sbr.rel (%p209) target = $region12
      $region11: #{tpu_custom_call.1} parent=5 // pred_region
        %s213 = ssub.s32 %s21, 1
        // Predicated region
        $region13: #{tpu_custom_call.1} parent=11 // pred_check
          %p214 = pneg %p68
        $region14: #{tpu_custom_call.1} parent=11 // pred_check_branch
          %216 = sbr.rel (%p214) target = $region16
        $region15: #{tpu_custom_call.1} parent=11 // pred_region
          %s218 = ssub.s32 8192, 8192
          %219 = vsyncadd [#allocation6], %s218
          %s220 = sshll.u32 [#allocation5], 4
          %s221 = int_to_ptr.vmem [resolvable:$true] %s220
          %226 = dma.hbm_to_vmem [thread:$0]  %s1, 8192, %s221, [#allocation6], 256, 256, 16
        $region16: #{tpu_custom_call.1} parent=11 // pred_fallthru
          _
        // Predicated region
        $region17: #{tpu_custom_call.1} parent=11 // pred_check
          %p227 = pneg %p89
        $region18: #{tpu_custom_call.1} parent=11 // pred_check_branch
          %229 = sbr.rel (%p227) target = $region20
        $region19: #{tpu_custom_call.1} parent=11 // pred_region
          %s231 = ssub.s32 64, 64
          %232 = vsyncadd [#allocation6], %s231
          %s234 = sshll.u32 [#allocation7], 4
          %s235 = int_to_ptr.vmem [resolvable:$true] %s234
          %237 = dma.hbm_to_vmem [thread:$0]  %s2, 64, %s235, [#allocation6]
        $region20: #{tpu_custom_call.1} parent=11 // pred_fallthru
          _
        // Predicated region
        $region21: #{tpu_custom_call.1} parent=11 // pred_check
          %p238 = pneg %p110
        $region22: #{tpu_custom_call.1} parent=11 // pred_check_branch
          %240 = sbr.rel (%p238) target = $region24
        $region23: #{tpu_custom_call.1} parent=11 // pred_region
          %s242 = ssub.s32 8192, 8192
          %243 = vsyncadd [#allocation9], %s242
          %s244 = sshll.u32 [#allocation8], 4
          %s245 = int_to_ptr.vmem [resolvable:$true] %s244
          %250 = dma.hbm_to_vmem [thread:$0]  %s3, 8192, %s245, [#allocation9], 128, 128, 8
        $region24: #{tpu_custom_call.1} parent=11 // pred_fallthru
          _
        // Predicated region
        $region25: #{tpu_custom_call.1} parent=11 // pred_check
          %p251 = pneg %p131
        $region26: #{tpu_custom_call.1} parent=11 // pred_check_branch
          %253 = sbr.rel (%p251) target = $region28
        $region27: #{tpu_custom_call.1} parent=11 // pred_region
          _
        $region28: #{tpu_custom_call.1} parent=11 // pred_fallthru
          _
        // Predicated region
        $region29: #{tpu_custom_call.1} parent=11 // pred_check
          %p254 = pneg %p152
        $region30: #{tpu_custom_call.1} parent=11 // pred_check_branch
          %256 = sbr.rel (%p254) target = $region32
        $region31: #{tpu_custom_call.1} parent=11 // pred_region
          _
        $region32: #{tpu_custom_call.1} parent=11 // pred_fallthru
          _
        // Predicated region
        $region33: #{tpu_custom_call.1} parent=11 // pred_check
          %p257 = pneg %p173
        $region34: #{tpu_custom_call.1} parent=11 // pred_check_branch
          %259 = sbr.rel (%p257) target = $region36
        $region35: #{tpu_custom_call.1} parent=11 // pred_region
          _
        $region36: #{tpu_custom_call.1} parent=11 // pred_fallthru
          _
      $region12: #{tpu_custom_call.1} parent=5 // pred_fallthru
        _
      %p260 = scmp.lt.s32.totalorder %s21, 2
      // Predicated region
      $region37: #{tpu_custom_call.1} parent=5 // pred_check
        %p261 = pneg %p260
      $region38: #{tpu_custom_call.1} parent=5 // pred_check_branch
        %263 = sbr.rel (%p261) target = $region40
      $region39: #{tpu_custom_call.1} parent=5 // pred_region
        // Predicated region
        $region41: #{tpu_custom_call.1} parent=39 // pred_check
          %p264 = pneg %p41
        $region42: #{tpu_custom_call.1} parent=39 // pred_check_branch
          %266 = sbr.rel (%p264) target = $region44
        $region43: #{tpu_custom_call.1} parent=39 // pred_region
          %s267 = sand.u32 %s31, 1
          %s268 = scalar_lea.sflag [#allocation3], %s267
          %s269 = sand.u32 %s31, 1
          %s270 = smul.addr %s269, 16
          %s271 = scalar_lea.vmem [#allocation2], %s270
          %s273 = ssub.s32 256, 256
          %274 = vsyncadd %s268, %s273
          %s275 = smul.addr %s21, 2
          %s276 = smul.addr %s275, 128
          %s277 = scalar_lea.hbm %s0, %s276
          %s279 = sshll.u32 %s271, 4
          %s280 = int_to_ptr.vmem [resolvable:$true] %s279
          %282 = dma.hbm_to_vmem [thread:$0]  %s277, 256, %s280, %s268
        $region44: #{tpu_custom_call.1} parent=39 // pred_fallthru
          _
      $region40: #{tpu_custom_call.1} parent=5 // pred_fallthru
        _
      %p283 = scmp.le.s32.totalorder 1, %s21
      %p284 = scmp.lt.s32.totalorder %s21, 3
      %p285 = pnand %p283, %p284
      %p286 = pneg %p285
      // Predicated region
      $region45: #{tpu_custom_call.1} parent=5 // pred_check
        _
      $region46: #{tpu_custom_call.1} parent=5 // pred_check_branch
        %288 = sbr.rel (%p285) target = $region48
      $region47: #{tpu_custom_call.1} parent=5 // pred_region
        %s289 = ssub.s32 %s21, 1
        %s290 = sand.u32 %s34, 1
        %s291 = scalar_lea.sflag [#allocation3], %s290
        %s292 = sand.u32 %s34, 1
        %s293 = smul.addr %s292, 16
        %s294 = scalar_lea.vmem [#allocation2], %s293
        // Predicated region
        $region49: #{tpu_custom_call.1} parent=47 // pred_check
          %p295 = pneg %p47
        $region50: #{tpu_custom_call.1} parent=47 // pred_check_branch
          %297 = sbr.rel (%p295) target = $region52
        $region51: #{tpu_custom_call.1} parent=47 // pred_region
          %298 = dma.done %s291, 256
        $region52: #{tpu_custom_call.1} parent=47 // pred_fallthru
          _
        // Predicated region
        $region53: #{tpu_custom_call.1} parent=47 // pred_check
          %p299 = pneg %p68
        $region54: #{tpu_custom_call.1} parent=47 // pred_check_branch
          %301 = sbr.rel (%p299) target = $region56
        $region55: #{tpu_custom_call.1} parent=47 // pred_region
          %302 = dma.done [#allocation6], 8192
        $region56: #{tpu_custom_call.1} parent=47 // pred_fallthru
          _
        // Predicated region
        $region57: #{tpu_custom_call.1} parent=47 // pred_check
          %p303 = pneg %p89
        $region58: #{tpu_custom_call.1} parent=47 // pred_check_branch
          %305 = sbr.rel (%p303) target = $region60
        $region59: #{tpu_custom_call.1} parent=47 // pred_region
          %306 = dma.done [#allocation6], 64
        $region60: #{tpu_custom_call.1} parent=47 // pred_fallthru
          _
        // Predicated region
        $region61: #{tpu_custom_call.1} parent=47 // pred_check
          %p307 = pneg %p110
        $region62: #{tpu_custom_call.1} parent=47 // pred_check_branch
          %309 = sbr.rel (%p307) target = $region64
        $region63: #{tpu_custom_call.1} parent=47 // pred_region
          %310 = dma.done [#allocation9], 8192
        $region64: #{tpu_custom_call.1} parent=47 // pred_fallthru
          _
        %s311 = sand.u32 %s34, 1
        %s312 = scalar_lea.sflag [#allocation3], %s311
        %s313 = sand.u32 %s34, 1
        %s314 = smul.addr %s313, 16
        %s315 = scalar_lea.vmem [#allocation2], %s314
        %p316 = pneg %p47
        %p317 = pneg %p44
        %p318 = pneg %p68
        %p319 = pneg %p65
        %p320 = pneg %p89
        %p321 = pneg %p86
        %p322 = pneg %p110
        %p323 = pneg %p107
        %p324 = pneg %p131
        %p325 = pneg %p128
        %p326 = pneg %p152
        %p327 = pneg %p149
        %p328 = pneg %p173
        %p329 = pneg %p170
        %p330 = pneg %p199
        %p331 = pneg %p196
        %s332 = sand.u32 %s186, 1
        %s333 = scalar_lea.sflag [#allocation4], %s332
        %s334 = sand.u32 %s186, 1
        %s335 = smul.addr %s334, 16
        %s336 = scalar_lea.vmem [#allocation10], %s335
        %v337 = vld [vmem:[%s294] sm:$0xff]
        %v338 = vld [vmem:[%s294 + $0x8] sm:$0xff]
        %v339 = vpack.c.bf16 %v337, %v337
        %v340 = vpack.c.bf16 %v338, %v338
        %v341 = vld [vmem:[#allocation5] sm:$0xff]
        %v342 = vld [vmem:[#allocation5 + $0x8] sm:$0xff]
        %v343 = vld [vmem:[#allocation5 + $0x10] sm:$0xff]
        %v344 = vld [vmem:[#allocation5 + $0x18] sm:$0xff]
        %v345 = vld [vmem:[#allocation5 + $0x20] sm:$0xff]
        %v346 = vld [vmem:[#allocation5 + $0x28] sm:$0xff]
        %v347 = vld [vmem:[#allocation5 + $0x30] sm:$0xff]
        %v348 = vld [vmem:[#allocation5 + $0x38] sm:$0xff]
        %v349 = vld [vmem:[#allocation5 + $0x40] sm:$0xff]
        %v350 = vld [vmem:[#allocation5 + $0x48] sm:$0xff]
        %v351 = vld [vmem:[#allocation5 + $0x50] sm:$0xff]
        %v352 = vld [vmem:[#allocation5 + $0x58] sm:$0xff]
        %v353 = vld [vmem:[#allocation5 + $0x60] sm:$0xff]
        %v354 = vld [vmem:[#allocation5 + $0x68] sm:$0xff]
        %v355 = vld [vmem:[#allocation5 + $0x70] sm:$0xff]
        %v356 = vld [vmem:[#allocation5 + $0x78] sm:$0xff]
        %v357 = vld [vmem:[#allocation5 + $0x80] sm:$0xff]
        %v358 = vld [vmem:[#allocation5 + $0x88] sm:$0xff]
        %v359 = vld [vmem:[#allocation5 + $0x90] sm:$0xff]
        %v360 = vld [vmem:[#allocation5 + $0x98] sm:$0xff]
        %v361 = vld [vmem:[#allocation5 + $0xa0] sm:$0xff]
        %v362 = vld [vmem:[#allocation5 + $0xa8] sm:$0xff]
        %v363 = vld [vmem:[#allocation5 + $0xb0] sm:$0xff]
        %v364 = vld [vmem:[#allocation5 + $0xb8] sm:$0xff]
        %v365 = vld [vmem:[#allocation5 + $0xc0] sm:$0xff]
        %v366 = vld [vmem:[#allocation5 + $0xc8] sm:$0xff]
        %v367 = vld [vmem:[#allocation5 + $0xd0] sm:$0xff]
        %v368 = vld [vmem:[#allocation5 + $0xd8] sm:$0xff]
        %v369 = vld [vmem:[#allocation5 + $0xe0] sm:$0xff]
        %v370 = vld [vmem:[#allocation5 + $0xe8] sm:$0xff]
        %v371 = vld [vmem:[#allocation5 + $0xf0] sm:$0xff]
        %v372 = vld [vmem:[#allocation5 + $0xf8] sm:$0xff]
        %v373 = vld [vmem:[#allocation5 + $0x100] sm:$0xff]
        %v374 = vld [vmem:[#allocation5 + $0x108] sm:$0xff]
        %v375 = vld [vmem:[#allocation5 + $0x110] sm:$0xff]
        %v376 = vld [vmem:[#allocation5 + $0x118] sm:$0xff]
        %v377 = vld [vmem:[#allocation5 + $0x120] sm:$0xff]
        %v378 = vld [vmem:[#allocation5 + $0x128] sm:$0xff]
        %v379 = vld [vmem:[#allocation5 + $0x130] sm:$0xff]
        %v380 = vld [vmem:[#allocation5 + $0x138] sm:$0xff]
        %v381 = vld [vmem:[#allocation5 + $0x140] sm:$0xff]
        %v382 = vld [vmem:[#allocation5 + $0x148] sm:$0xff]
        %v383 = vld [vmem:[#allocation5 + $0x150] sm:$0xff]
        %v384 = vld [vmem:[#allocation5 + $0x158] sm:$0xff]
        %v385 = vld [vmem:[#allocation5 + $0x160] sm:$0xff]
        %v386 = vld [vmem:[#allocation5 + $0x168] sm:$0xff]
        %v387 = vld [vmem:[#allocation5 + $0x170] sm:$0xff]
        %v388 = vld [vmem:[#allocation5 + $0x178] sm:$0xff]
        %v389 = vld [vmem:[#allocation5 + $0x180] sm:$0xff]
        %v390 = vld [vmem:[#allocation5 + $0x188] sm:$0xff]
        %v391 = vld [vmem:[#allocation5 + $0x190] sm:$0xff]
        %v392 = vld [vmem:[#allocation5 + $0x198] sm:$0xff]
        %v393 = vld [vmem:[#allocation5 + $0x1a0] sm:$0xff]
        %v394 = vld [vmem:[#allocation5 + $0x1a8] sm:$0xff]
        %v395 = vld [vmem:[#allocation5 + $0x1b0] sm:$0xff]
        %v396 = vld [vmem:[#allocation5 + $0x1b8] sm:$0xff]
        %v397 = vld [vmem:[#allocation5 + $0x1c0] sm:$0xff]
        %v398 = vld [vmem:[#allocation5 + $0x1c8] sm:$0xff]
        %v399 = vld [vmem:[#allocation5 + $0x1d0] sm:$0xff]
        %v400 = vld [vmem:[#allocation5 + $0x1d8] sm:$0xff]
        %v401 = vld [vmem:[#allocation5 + $0x1e0] sm:$0xff]
        %v402 = vld [vmem:[#allocation5 + $0x1e8] sm:$0xff]
        %v403 = vld [vmem:[#allocation5 + $0x1f0] sm:$0xff]
        %v404 = vld [vmem:[#allocation5 + $0x1f8] sm:$0xff]
        %v405 = vld [vmem:[#allocation7] sm:$0xf]
        %v407 = vlaneseq
        %v408 = vshrl.u32 %v407, 7
        %v409 = vsub.s32 0, %v408
        %v410 = vrot.slane %v405, %v409
        %v411 = vlaneseq
        %v412 = vshrl.u32 %v411, 7
        %v413 = vsub.s32 1, %v412
        %v414 = vrot.slane %v405, %v413
        %v415 = vlaneseq
        %v416 = vshrl.u32 %v415, 7
        %v417 = vsub.s32 2, %v416
        %v418 = vrot.slane %v405, %v417
        %v419 = vlaneseq
        %v420 = vshrl.u32 %v419, 7
        %v421 = vsub.s32 3, %v420
        %v422 = vrot.slane %v405, %v421
        %v491 = vunpack.c.l.b16 %v341
        %v492 = vunpack.c.h.b16 %v341
        %v493 = vunpack.c.l.b16 %v342
        %v494 = vunpack.c.h.b16 %v342
        %v495 = vunpack.c.l.b16 %v343
        %v496 = vunpack.c.h.b16 %v343
        %v497 = vunpack.c.l.b16 %v344
        %v498 = vunpack.c.h.b16 %v344
        %v499 = vunpack.c.l.b16 %v345
        %v500 = vunpack.c.h.b16 %v345
        %v501 = vunpack.c.l.b16 %v346
        %v502 = vunpack.c.h.b16 %v346
        %v503 = vunpack.c.l.b16 %v347
        %v504 = vunpack.c.h.b16 %v347
        %v505 = vunpack.c.l.b16 %v348
        %v506 = vunpack.c.h.b16 %v348
        %v507 = vunpack.c.l.b16 %v349
        %v508 = vunpack.c.h.b16 %v349
        %v509 = vunpack.c.l.b16 %v350
        %v510 = vunpack.c.h.b16 %v350
        %v511 = vunpack.c.l.b16 %v351
        %v512 = vunpack.c.h.b16 %v351
        %v513 = vunpack.c.l.b16 %v352
        %v514 = vunpack.c.h.b16 %v352
        %v515 = vunpack.c.l.b16 %v353
        %v516 = vunpack.c.h.b16 %v353
        %v517 = vunpack.c.l.b16 %v354
        %v518 = vunpack.c.h.b16 %v354
        %v519 = vunpack.c.l.b16 %v355
        %v520 = vunpack.c.h.b16 %v355
        %v521 = vunpack.c.l.b16 %v356
        %v522 = vunpack.c.h.b16 %v356
        %v523 = vunpack.c.l.b16 %v357
        %v524 = vunpack.c.h.b16 %v357
        %v525 = vunpack.c.l.b16 %v358
        %v526 = vunpack.c.h.b16 %v358
        %v527 = vunpack.c.l.b16 %v359
        %v528 = vunpack.c.h.b16 %v359
        %v529 = vunpack.c.l.b16 %v360
        %v530 = vunpack.c.h.b16 %v360
        %v531 = vunpack.c.l.b16 %v361
        %v532 = vunpack.c.h.b16 %v361
        %v533 = vunpack.c.l.b16 %v362
        %v534 = vunpack.c.h.b16 %v362
        %v535 = vunpack.c.l.b16 %v363
        %v536 = vunpack.c.h.b16 %v363
        %v537 = vunpack.c.l.b16 %v364
        %v538 = vunpack.c.h.b16 %v364
        %v539 = vunpack.c.l.b16 %v365
        %v540 = vunpack.c.h.b16 %v365
        %v541 = vunpack.c.l.b16 %v366
        %v542 = vunpack.c.h.b16 %v366
        %v543 = vunpack.c.l.b16 %v367
        %v544 = vunpack.c.h.b16 %v367
        %v545 = vunpack.c.l.b16 %v368
        %v546 = vunpack.c.h.b16 %v368
        %v547 = vunpack.c.l.b16 %v369
        %v548 = vunpack.c.h.b16 %v369
        %v549 = vunpack.c.l.b16 %v370
        %v550 = vunpack.c.h.b16 %v370
        %v551 = vunpack.c.l.b16 %v371
        %v552 = vunpack.c.h.b16 %v371
        %v553 = vunpack.c.l.b16 %v372
        %v554 = vunpack.c.h.b16 %v372
        %v555 = vunpack.c.l.b16 %v373
        %v556 = vunpack.c.h.b16 %v373
        %v557 = vunpack.c.l.b16 %v374
        %v558 = vunpack.c.h.b16 %v374
        %v559 = vunpack.c.l.b16 %v375
        %v560 = vunpack.c.h.b16 %v375
        %v561 = vunpack.c.l.b16 %v376
        %v562 = vunpack.c.h.b16 %v376
        %v563 = vunpack.c.l.b16 %v377
        %v564 = vunpack.c.h.b16 %v377
        %v565 = vunpack.c.l.b16 %v378
        %v566 = vunpack.c.h.b16 %v378
        %v567 = vunpack.c.l.b16 %v379
        %v568 = vunpack.c.h.b16 %v379
        %v569 = vunpack.c.l.b16 %v380
        %v570 = vunpack.c.h.b16 %v380
        %v571 = vunpack.c.l.b16 %v381
        %v572 = vunpack.c.h.b16 %v381
        %v573 = vunpack.c.l.b16 %v382
        %v574 = vunpack.c.h.b16 %v382
        %v575 = vunpack.c.l.b16 %v383
        %v576 = vunpack.c.h.b16 %v383
        %v577 = vunpack.c.l.b16 %v384
        %v578 = vunpack.c.h.b16 %v384
        %v579 = vunpack.c.l.b16 %v385
        %v580 = vunpack.c.h.b16 %v385
        %v581 = vunpack.c.l.b16 %v386
        %v582 = vunpack.c.h.b16 %v386
        %v583 = vunpack.c.l.b16 %v387
        %v584 = vunpack.c.h.b16 %v387
        %v585 = vunpack.c.l.b16 %v388
        %v586 = vunpack.c.h.b16 %v388
        %v587 = vunpack.c.l.b16 %v389
        %v588 = vunpack.c.h.b16 %v389
        %v589 = vunpack.c.l.b16 %v390
        %v590 = vunpack.c.h.b16 %v390
        %v591 = vunpack.c.l.b16 %v391
        %v592 = vunpack.c.h.b16 %v391
        %v593 = vunpack.c.l.b16 %v392
        %v594 = vunpack.c.h.b16 %v392
        %v595 = vunpack.c.l.b16 %v393
        %v596 = vunpack.c.h.b16 %v393
        %v597 = vunpack.c.l.b16 %v394
        %v598 = vunpack.c.h.b16 %v394
        %v599 = vunpack.c.l.b16 %v395
        %v600 = vunpack.c.h.b16 %v395
        %v601 = vunpack.c.l.b16 %v396
        %v602 = vunpack.c.h.b16 %v396
        %v603 = vunpack.c.l.b16 %v397
        %v604 = vunpack.c.h.b16 %v397
        %v605 = vunpack.c.l.b16 %v398
        %v606 = vunpack.c.h.b16 %v398
        %v607 = vunpack.c.l.b16 %v399
        %v608 = vunpack.c.h.b16 %v399
        %v609 = vunpack.c.l.b16 %v400
        %v610 = vunpack.c.h.b16 %v400
        %v611 = vunpack.c.l.b16 %v401
        %v612 = vunpack.c.h.b16 %v401
        %v613 = vunpack.c.l.b16 %v402
        %v614 = vunpack.c.h.b16 %v402
        %v615 = vunpack.c.l.b16 %v403
        %v616 = vunpack.c.h.b16 %v403
        %v617 = vunpack.c.l.b16 %v404
        %v618 = vunpack.c.h.b16 %v404
        %v619 = vpack.c.b16 %v495, %v491
        %v620 = vpack.c.b16 %v496, %v492
        %v621 = vpack.c.b16 %v497, %v493
        %v622 = vpack.c.b16 %v498, %v494
        %v623 = vpack.c.b16 %v503, %v499
        %v624 = vpack.c.b16 %v504, %v500
        %v625 = vpack.c.b16 %v505, %v501
        %v626 = vpack.c.b16 %v506, %v502
        %v627 = vpack.c.b16 %v511, %v507
        %v628 = vpack.c.b16 %v512, %v508
        %v629 = vpack.c.b16 %v513, %v509
        %v630 = vpack.c.b16 %v514, %v510
        %v631 = vpack.c.b16 %v519, %v515
        %v632 = vpack.c.b16 %v520, %v516
        %v633 = vpack.c.b16 %v521, %v517
        %v634 = vpack.c.b16 %v522, %v518
        %v635 = vpack.c.b16 %v527, %v523
        %v636 = vpack.c.b16 %v528, %v524
        %v637 = vpack.c.b16 %v529, %v525
        %v638 = vpack.c.b16 %v530, %v526
        %v639 = vpack.c.b16 %v535, %v531
        %v640 = vpack.c.b16 %v536, %v532
        %v641 = vpack.c.b16 %v537, %v533
        %v642 = vpack.c.b16 %v538, %v534
        %v643 = vpack.c.b16 %v543, %v539
        %v644 = vpack.c.b16 %v544, %v540
        %v645 = vpack.c.b16 %v545, %v541
        %v646 = vpack.c.b16 %v546, %v542
        %v647 = vpack.c.b16 %v551, %v547
        %v648 = vpack.c.b16 %v552, %v548
        %v649 = vpack.c.b16 %v553, %v549
        %v650 = vpack.c.b16 %v554, %v550
        %v651 = vpack.c.b16 %v559, %v555
        %v652 = vpack.c.b16 %v560, %v556
        %v653 = vpack.c.b16 %v561, %v557
        %v654 = vpack.c.b16 %v562, %v558
        %v655 = vpack.c.b16 %v567, %v563
        %v656 = vpack.c.b16 %v568, %v564
        %v657 = vpack.c.b16 %v569, %v565
        %v658 = vpack.c.b16 %v570, %v566
        %v659 = vpack.c.b16 %v575, %v571
        %v660 = vpack.c.b16 %v576, %v572
        %v661 = vpack.c.b16 %v577, %v573
        %v662 = vpack.c.b16 %v578, %v574
        %v663 = vpack.c.b16 %v583, %v579
        %v664 = vpack.c.b16 %v584, %v580
        %v665 = vpack.c.b16 %v585, %v581
        %v666 = vpack.c.b16 %v586, %v582
        %v667 = vpack.c.b16 %v591, %v587
        %v668 = vpack.c.b16 %v592, %v588
        %v669 = vpack.c.b16 %v593, %v589
        %v670 = vpack.c.b16 %v594, %v590
        %v671 = vpack.c.b16 %v599, %v595
        %v672 = vpack.c.b16 %v600, %v596
        %v673 = vpack.c.b16 %v601, %v597
        %v674 = vpack.c.b16 %v602, %v598
        %v675 = vpack.c.b16 %v607, %v603
        %v676 = vpack.c.b16 %v608, %v604
        %v677 = vpack.c.b16 %v609, %v605
        %v678 = vpack.c.b16 %v610, %v606
        %v679 = vpack.c.b16 %v615, %v611
        %v680 = vpack.c.b16 %v616, %v612
        %v681 = vpack.c.b16 %v617, %v613
        %v682 = vpack.c.b16 %v618, %v614
        %747 = vmatprep.subr.bf16.mxu0 %v648
        %748 = vmatpush1.bf16.msra.mxu0 %v647
        %749 = vmatprep.subr.bf16.mxu0 %v644
        %750 = vmatpush1.bf16.msra.mxu0 %v643
        %751 = vmatprep.subr.bf16.mxu0 %v640
        %752 = vmatpush1.bf16.msra.mxu0 %v639
        %753 = vmatprep.subr.bf16.mxu0 %v636
        %754 = vmatpush1.bf16.msra.mxu0 %v635
        %755 = vmatprep.subr.bf16.mxu0 %v632
        %756 = vmatpush1.bf16.msra.mxu0 %v631
        %757 = vmatprep.subr.bf16.mxu0 %v628
        %758 = vmatpush1.bf16.msra.mxu0 %v627
        %759 = vmatprep.subr.bf16.mxu0 %v624
        %760 = vmatpush1.bf16.msra.mxu0 %v623
        %761 = vmatprep.subr.bf16.mxu0 %v620
        %762 = vmatpush1.bf16.msra.mxu0 %v619
        %763 = vmatprep.subr.bf16.mxu0 %v680
        %764 = vmatpush2.bf16.msra.mxu0 %v679
        %765 = vmatprep.subr.bf16.mxu0 %v676
        %766 = vmatpush2.bf16.msra.mxu0 %v675
        %767 = vmatprep.subr.bf16.mxu0 %v672
        %768 = vmatpush2.bf16.msra.mxu0 %v671
        %769 = vmatprep.subr.bf16.mxu0 %v668
        %770 = vmatpush2.bf16.msra.mxu0 %v667
        %771 = vmatprep.subr.bf16.mxu0 %v664
        %772 = vmatpush2.bf16.msra.mxu0 %v663
        %773 = vmatprep.subr.bf16.mxu0 %v660
        %774 = vmatpush2.bf16.msra.mxu0 %v659
        %775 = vmatprep.subr.bf16.mxu0 %v656
        %776 = vmatpush2.bf16.msra.mxu0 %v655
        %777 = vmatprep.subr.bf16.mxu0 %v652
        %778 = vmatpush2.bf16.msra.mxu0 %v651
        %779 = vmatprep.mubr.bf16.mxu0 %v340
        %780 = vmatmul.mubr.bf16.gmra.mxu0 %v339
        %v781 = vpop.f32.mrf.mxu0
        %v782 = vadd.f32 %v410, %v781
        %v783 = vpop.f32.mrf.mxu0
        %v784 = vadd.f32 %v414, %v783
        %v785 = vpop.f32.mrf.mxu0
        %v786 = vpop.f32.mrf.mxu0
        %787 = vdwg.mxu0
        %788 = vmatprep.subr.bf16.mxu0 %v650
        %789 = vmatpush1.bf16.msra.mxu0 %v649
        %790 = vmatprep.subr.bf16.mxu0 %v646
        %791 = vmatpush1.bf16.msra.mxu0 %v645
        %792 = vmatprep.subr.bf16.mxu0 %v642
        %793 = vmatpush1.bf16.msra.mxu0 %v641
        %794 = vmatprep.subr.bf16.mxu0 %v638
        %795 = vmatpush1.bf16.msra.mxu0 %v637
        %796 = vmatprep.subr.bf16.mxu0 %v634
        %797 = vmatpush1.bf16.msra.mxu0 %v633
        %798 = vmatprep.subr.bf16.mxu0 %v630
        %799 = vmatpush1.bf16.msra.mxu0 %v629
        %800 = vmatprep.subr.bf16.mxu0 %v626
        %801 = vmatpush1.bf16.msra.mxu0 %v625
        %802 = vmatprep.subr.bf16.mxu0 %v622
        %803 = vmatpush1.bf16.msra.mxu0 %v621
        %804 = vmatprep.subr.bf16.mxu0 %v682
        %805 = vmatpush2.bf16.msra.mxu0 %v681
        %806 = vmatprep.subr.bf16.mxu0 %v678
        %807 = vmatpush2.bf16.msra.mxu0 %v677
        %808 = vmatprep.subr.bf16.mxu0 %v674
        %809 = vmatpush2.bf16.msra.mxu0 %v673
        %810 = vmatprep.subr.bf16.mxu0 %v670
        %811 = vmatpush2.bf16.msra.mxu0 %v669
        %812 = vmatprep.subr.bf16.mxu0 %v666
        %813 = vmatpush2.bf16.msra.mxu0 %v665
        %814 = vmatprep.subr.bf16.mxu0 %v662
        %815 = vmatpush2.bf16.msra.mxu0 %v661
        %816 = vmatprep.subr.bf16.mxu0 %v658
        %817 = vmatpush2.bf16.msra.mxu0 %v657
        %818 = vmatprep.subr.bf16.mxu0 %v654
        %819 = vmatpush2.bf16.msra.mxu0 %v653
        %820 = vmatprep.mubr.bf16.mxu0 %v340
        %821 = vmatmul.mubr.bf16.gmra.mxu0 %v339
        %v822 = vpop.f32.mrf.mxu0
        %v823 = vadd.f32 %v418, %v822
        %v824 = vpop.f32.mrf.mxu0
        %v825 = vadd.f32 %v422, %v824
        %v826 = vpop.f32.mrf.mxu0
        %v827 = vpop.f32.mrf.mxu0
        %828 = vdwg.mxu0
        %v829 = vmul.f32 %v782, 0.5
        %v830 = vmul.f32 %v784, 0.5
        %v831 = vmul.f32 %v823, 0.5
        %v832 = vmul.f32 %v825, 0.5
        %v833 = vrcp.pop 1.4142135
        %v834 = vmul.f32 %v782, %v833
        %v835 = vmul.f32 %v784, %v833
        %v836 = vmul.f32 %v823, %v833
        %v837 = vmul.f32 %v825, %v833
        %v838 = verf.f32.pop %v834
        %v839 = verf.f32.pop %v835
        %v840 = verf.f32.pop %v836
        %v841 = verf.f32.pop %v837
        %v842 = vadd.f32 %v838, 1.0
        %v843 = vadd.f32 %v839, 1.0
        %v844 = vadd.f32 %v840, 1.0
        %v845 = vadd.f32 %v841, 1.0
        %v846 = vmul.f32 %v829, %v842
        %v847 = vmul.f32 %v830, %v843
        %v848 = vmul.f32 %v831, %v844
        %v849 = vmul.f32 %v832, %v845
        %v850 = vpack.c.bf16 %v846, %v846
        %v851 = vpack.c.bf16 %v847, %v847
        %v852 = vpack.c.bf16 %v848, %v848
        %v853 = vpack.c.bf16 %v849, %v849
        %v854 = vld [vmem:[#allocation8] sm:$0xff]
        %v855 = vld [vmem:[#allocation8 + $0x8] sm:$0xff]
        %v856 = vld [vmem:[#allocation8 + $0x10] sm:$0xff]
        %v857 = vld [vmem:[#allocation8 + $0x18] sm:$0xff]
        %v858 = vld [vmem:[#allocation8 + $0x20] sm:$0xff]
        %v859 = vld [vmem:[#allocation8 + $0x28] sm:$0xff]
        %v860 = vld [vmem:[#allocation8 + $0x30] sm:$0xff]
        %v861 = vld [vmem:[#allocation8 + $0x38] sm:$0xff]
        %v862 = vld [vmem:[#allocation8 + $0x40] sm:$0xff]
        %v863 = vld [vmem:[#allocation8 + $0x48] sm:$0xff]
        %v864 = vld [vmem:[#allocation8 + $0x50] sm:$0xff]
        %v865 = vld [vmem:[#allocation8 + $0x58] sm:$0xff]
        %v866 = vld [vmem:[#allocation8 + $0x60] sm:$0xff]
        %v867 = vld [vmem:[#allocation8 + $0x68] sm:$0xff]
        %v868 = vld [vmem:[#allocation8 + $0x70] sm:$0xff]
        %v869 = vld [vmem:[#allocation8 + $0x78] sm:$0xff]
        %v870 = vld [vmem:[#allocation8 + $0x80] sm:$0xff]
        %v871 = vld [vmem:[#allocation8 + $0x88] sm:$0xff]
        %v872 = vld [vmem:[#allocation8 + $0x90] sm:$0xff]
        %v873 = vld [vmem:[#allocation8 + $0x98] sm:$0xff]
        %v874 = vld [vmem:[#allocation8 + $0xa0] sm:$0xff]
        %v875 = vld [vmem:[#allocation8 + $0xa8] sm:$0xff]
        %v876 = vld [vmem:[#allocation8 + $0xb0] sm:$0xff]
        %v877 = vld [vmem:[#allocation8 + $0xb8] sm:$0xff]
        %v878 = vld [vmem:[#allocation8 + $0xc0] sm:$0xff]
        %v879 = vld [vmem:[#allocation8 + $0xc8] sm:$0xff]
        %v880 = vld [vmem:[#allocation8 + $0xd0] sm:$0xff]
        %v881 = vld [vmem:[#allocation8 + $0xd8] sm:$0xff]
        %v882 = vld [vmem:[#allocation8 + $0xe0] sm:$0xff]
        %v883 = vld [vmem:[#allocation8 + $0xe8] sm:$0xff]
        %v884 = vld [vmem:[#allocation8 + $0xf0] sm:$0xff]
        %v885 = vld [vmem:[#allocation8 + $0xf8] sm:$0xff]
        %v886 = vld [vmem:[#allocation8 + $0x100] sm:$0xff]
        %v887 = vld [vmem:[#allocation8 + $0x108] sm:$0xff]
        %v888 = vld [vmem:[#allocation8 + $0x110] sm:$0xff]
        %v889 = vld [vmem:[#allocation8 + $0x118] sm:$0xff]
        %v890 = vld [vmem:[#allocation8 + $0x120] sm:$0xff]
        %v891 = vld [vmem:[#allocation8 + $0x128] sm:$0xff]
        %v892 = vld [vmem:[#allocation8 + $0x130] sm:$0xff]
        %v893 = vld [vmem:[#allocation8 + $0x138] sm:$0xff]
        %v894 = vld [vmem:[#allocation8 + $0x140] sm:$0xff]
        %v895 = vld [vmem:[#allocation8 + $0x148] sm:$0xff]
        %v896 = vld [vmem:[#allocation8 + $0x150] sm:$0xff]
        %v897 = vld [vmem:[#allocation8 + $0x158] sm:$0xff]
        %v898 = vld [vmem:[#allocation8 + $0x160] sm:$0xff]
        %v899 = vld [vmem:[#allocation8 + $0x168] sm:$0xff]
        %v900 = vld [vmem:[#allocation8 + $0x170] sm:$0xff]
        %v901 = vld [vmem:[#allocation8 + $0x178] sm:$0xff]
        %v902 = vld [vmem:[#allocation8 + $0x180] sm:$0xff]
        %v903 = vld [vmem:[#allocation8 + $0x188] sm:$0xff]
        %v904 = vld [vmem:[#allocation8 + $0x190] sm:$0xff]
        %v905 = vld [vmem:[#allocation8 + $0x198] sm:$0xff]
        %v906 = vld [vmem:[#allocation8 + $0x1a0] sm:$0xff]
        %v907 = vld [vmem:[#allocation8 + $0x1a8] sm:$0xff]
        %v908 = vld [vmem:[#allocation8 + $0x1b0] sm:$0xff]
        %v909 = vld [vmem:[#allocation8 + $0x1b8] sm:$0xff]
        %v910 = vld [vmem:[#allocation8 + $0x1c0] sm:$0xff]
        %v911 = vld [vmem:[#allocation8 + $0x1c8] sm:$0xff]
        %v912 = vld [vmem:[#allocation8 + $0x1d0] sm:$0xff]
        %v913 = vld [vmem:[#allocation8 + $0x1d8] sm:$0xff]
        %v914 = vld [vmem:[#allocation8 + $0x1e0] sm:$0xff]
        %v915 = vld [vmem:[#allocation8 + $0x1e8] sm:$0xff]
        %v916 = vld [vmem:[#allocation8 + $0x1f0] sm:$0xff]
        %v917 = vld [vmem:[#allocation8 + $0x1f8] sm:$0xff]
        %v918 = vld [vmem:[%s4] sm:$0x3]
        %v920 = vlaneseq
        %v921 = vshrl.u32 %v920, 7
        %v922 = vsub.s32 0, %v921
        %v923 = vrot.slane %v918, %v922
        %v924 = vlaneseq
        %v925 = vshrl.u32 %v924, 7
        %v926 = vsub.s32 1, %v925
        %v927 = vrot.slane %v918, %v926
        %v994 = vunpack.c.l.b16 %v854
        %v995 = vunpack.c.h.b16 %v854
        %v996 = vunpack.c.l.b16 %v855
        %v997 = vunpack.c.h.b16 %v855
        %v998 = vunpack.c.l.b16 %v856
        %v999 = vunpack.c.h.b16 %v856
        %v1000 = vunpack.c.l.b16 %v857
        %v1001 = vunpack.c.h.b16 %v857
        %v1002 = vunpack.c.l.b16 %v858
        %v1003 = vunpack.c.h.b16 %v858
        %v1004 = vunpack.c.l.b16 %v859
        %v1005 = vunpack.c.h.b16 %v859
        %v1006 = vunpack.c.l.b16 %v860
        %v1007 = vunpack.c.h.b16 %v860
        %v1008 = vunpack.c.l.b16 %v861
        %v1009 = vunpack.c.h.b16 %v861
        %v1010 = vunpack.c.l.b16 %v862
        %v1011 = vunpack.c.h.b16 %v862
        %v1012 = vunpack.c.l.b16 %v863
        %v1013 = vunpack.c.h.b16 %v863
        %v1014 = vunpack.c.l.b16 %v864
        %v1015 = vunpack.c.h.b16 %v864
        %v1016 = vunpack.c.l.b16 %v865
        %v1017 = vunpack.c.h.b16 %v865
        %v1018 = vunpack.c.l.b16 %v866
        %v1019 = vunpack.c.h.b16 %v866
        %v1020 = vunpack.c.l.b16 %v867
        %v1021 = vunpack.c.h.b16 %v867
        %v1022 = vunpack.c.l.b16 %v868
        %v1023 = vunpack.c.h.b16 %v868
        %v1024 = vunpack.c.l.b16 %v869
        %v1025 = vunpack.c.h.b16 %v869
        %v1026 = vunpack.c.l.b16 %v870
        %v1027 = vunpack.c.h.b16 %v870
        %v1028 = vunpack.c.l.b16 %v871
        %v1029 = vunpack.c.h.b16 %v871
        %v1030 = vunpack.c.l.b16 %v872
        %v1031 = vunpack.c.h.b16 %v872
        %v1032 = vunpack.c.l.b16 %v873
        %v1033 = vunpack.c.h.b16 %v873
        %v1034 = vunpack.c.l.b16 %v874
        %v1035 = vunpack.c.h.b16 %v874
        %v1036 = vunpack.c.l.b16 %v875
        %v1037 = vunpack.c.h.b16 %v875
        %v1038 = vunpack.c.l.b16 %v876
        %v1039 = vunpack.c.h.b16 %v876
        %v1040 = vunpack.c.l.b16 %v877
        %v1041 = vunpack.c.h.b16 %v877
        %v1042 = vunpack.c.l.b16 %v878
        %v1043 = vunpack.c.h.b16 %v878
        %v1044 = vunpack.c.l.b16 %v879
        %v1045 = vunpack.c.h.b16 %v879
        %v1046 = vunpack.c.l.b16 %v880
        %v1047 = vunpack.c.h.b16 %v880
        %v1048 = vunpack.c.l.b16 %v881
        %v1049 = vunpack.c.h.b16 %v881
        %v1050 = vunpack.c.l.b16 %v882
        %v1051 = vunpack.c.h.b16 %v882
        %v1052 = vunpack.c.l.b16 %v883
        %v1053 = vunpack.c.h.b16 %v883
        %v1054 = vunpack.c.l.b16 %v884
        %v1055 = vunpack.c.h.b16 %v884
        %v1056 = vunpack.c.l.b16 %v885
        %v1057 = vunpack.c.h.b16 %v885
        %v1058 = vunpack.c.l.b16 %v886
        %v1059 = vunpack.c.h.b16 %v886
        %v1060 = vunpack.c.l.b16 %v887
        %v1061 = vunpack.c.h.b16 %v887
        %v1062 = vunpack.c.l.b16 %v888
        %v1063 = vunpack.c.h.b16 %v888
        %v1064 = vunpack.c.l.b16 %v889
        %v1065 = vunpack.c.h.b16 %v889
        %v1066 = vunpack.c.l.b16 %v890
        %v1067 = vunpack.c.h.b16 %v890
        %v1068 = vunpack.c.l.b16 %v891
        %v1069 = vunpack.c.h.b16 %v891
        %v1070 = vunpack.c.l.b16 %v892
        %v1071 = vunpack.c.h.b16 %v892
        %v1072 = vunpack.c.l.b16 %v893
        %v1073 = vunpack.c.h.b16 %v893
        %v1074 = vunpack.c.l.b16 %v894
        %v1075 = vunpack.c.h.b16 %v894
        %v1076 = vunpack.c.l.b16 %v895
        %v1077 = vunpack.c.h.b16 %v895
        %v1078 = vunpack.c.l.b16 %v896
        %v1079 = vunpack.c.h.b16 %v896
        %v1080 = vunpack.c.l.b16 %v897
        %v1081 = vunpack.c.h.b16 %v897
        %v1082 = vunpack.c.l.b16 %v898
        %v1083 = vunpack.c.h.b16 %v898
        %v1084 = vunpack.c.l.b16 %v899
        %v1085 = vunpack.c.h.b16 %v899
        %v1086 = vunpack.c.l.b16 %v900
        %v1087 = vunpack.c.h.b16 %v900
        %v1088 = vunpack.c.l.b16 %v901
        %v1089 = vunpack.c.h.b16 %v901
        %v1090 = vunpack.c.l.b16 %v902
        %v1091 = vunpack.c.h.b16 %v902
        %v1092 = vunpack.c.l.b16 %v903
        %v1093 = vunpack.c.h.b16 %v903
        %v1094 = vunpack.c.l.b16 %v904
        %v1095 = vunpack.c.h.b16 %v904
        %v1096 = vunpack.c.l.b16 %v905
        %v1097 = vunpack.c.h.b16 %v905
        %v1098 = vunpack.c.l.b16 %v906
        %v1099 = vunpack.c.h.b16 %v906
        %v1100 = vunpack.c.l.b16 %v907
        %v1101 = vunpack.c.h.b16 %v907
        %v1102 = vunpack.c.l.b16 %v908
        %v1103 = vunpack.c.h.b16 %v908
        %v1104 = vunpack.c.l.b16 %v909
        %v1105 = vunpack.c.h.b16 %v909
        %v1106 = vunpack.c.l.b16 %v910
        %v1107 = vunpack.c.h.b16 %v910
        %v1108 = vunpack.c.l.b16 %v911
        %v1109 = vunpack.c.h.b16 %v911
        %v1110 = vunpack.c.l.b16 %v912
        %v1111 = vunpack.c.h.b16 %v912
        %v1112 = vunpack.c.l.b16 %v913
        %v1113 = vunpack.c.h.b16 %v913
        %v1114 = vunpack.c.l.b16 %v914
        %v1115 = vunpack.c.h.b16 %v914
        %v1116 = vunpack.c.l.b16 %v915
        %v1117 = vunpack.c.h.b16 %v915
        %v1118 = vunpack.c.l.b16 %v916
        %v1119 = vunpack.c.h.b16 %v916
        %v1120 = vunpack.c.l.b16 %v917
        %v1121 = vunpack.c.h.b16 %v917
        %v1122 = vpack.c.b16 %v996, %v994
        %v1123 = vpack.c.b16 %v997, %v995
        %v1124 = vpack.c.b16 %v1000, %v998
        %v1125 = vpack.c.b16 %v1001, %v999
        %v1126 = vpack.c.b16 %v1004, %v1002
        %v1127 = vpack.c.b16 %v1005, %v1003
        %v1128 = vpack.c.b16 %v1008, %v1006
        %v1129 = vpack.c.b16 %v1009, %v1007
        %v1130 = vpack.c.b16 %v1012, %v1010
        %v1131 = vpack.c.b16 %v1013, %v1011
        %v1132 = vpack.c.b16 %v1016, %v1014
        %v1133 = vpack.c.b16 %v1017, %v1015
        %v1134 = vpack.c.b16 %v1020, %v1018
        %v1135 = vpack.c.b16 %v1021, %v1019
        %v1136 = vpack.c.b16 %v1024, %v1022
        %v1137 = vpack.c.b16 %v1025, %v1023
        %v1138 = vpack.c.b16 %v1028, %v1026
        %v1139 = vpack.c.b16 %v1029, %v1027
        %v1140 = vpack.c.b16 %v1032, %v1030
        %v1141 = vpack.c.b16 %v1033, %v1031
        %v1142 = vpack.c.b16 %v1036, %v1034
        %v1143 = vpack.c.b16 %v1037, %v1035
        %v1144 = vpack.c.b16 %v1040, %v1038
        %v1145 = vpack.c.b16 %v1041, %v1039
        %v1146 = vpack.c.b16 %v1044, %v1042
        %v1147 = vpack.c.b16 %v1045, %v1043
        %v1148 = vpack.c.b16 %v1048, %v1046
        %v1149 = vpack.c.b16 %v1049, %v1047
        %v1150 = vpack.c.b16 %v1052, %v1050
        %v1151 = vpack.c.b16 %v1053, %v1051
        %v1152 = vpack.c.b16 %v1056, %v1054
        %v1153 = vpack.c.b16 %v1057, %v1055
        %v1154 = vpack.c.b16 %v1060, %v1058
        %v1155 = vpack.c.b16 %v1061, %v1059
        %v1156 = vpack.c.b16 %v1064, %v1062
        %v1157 = vpack.c.b16 %v1065, %v1063
        %v1158 = vpack.c.b16 %v1068, %v1066
        %v1159 = vpack.c.b16 %v1069, %v1067
        %v1160 = vpack.c.b16 %v1072, %v1070
        %v1161 = vpack.c.b16 %v1073, %v1071
        %v1162 = vpack.c.b16 %v1076, %v1074
        %v1163 = vpack.c.b16 %v1077, %v1075
        %v1164 = vpack.c.b16 %v1080, %v1078
        %v1165 = vpack.c.b16 %v1081, %v1079
        %v1166 = vpack.c.b16 %v1084, %v1082
        %v1167 = vpack.c.b16 %v1085, %v1083
        %v1168 = vpack.c.b16 %v1088, %v1086
        %v1169 = vpack.c.b16 %v1089, %v1087
        %v1170 = vpack.c.b16 %v1092, %v1090
        %v1171 = vpack.c.b16 %v1093, %v1091
        %v1172 = vpack.c.b16 %v1096, %v1094
        %v1173 = vpack.c.b16 %v1097, %v1095
        %v1174 = vpack.c.b16 %v1100, %v1098
        %v1175 = vpack.c.b16 %v1101, %v1099
        %v1176 = vpack.c.b16 %v1104, %v1102
        %v1177 = vpack.c.b16 %v1105, %v1103
        %v1178 = vpack.c.b16 %v1108, %v1106
        %v1179 = vpack.c.b16 %v1109, %v1107
        %v1180 = vpack.c.b16 %v1112, %v1110
        %v1181 = vpack.c.b16 %v1113, %v1111
        %v1182 = vpack.c.b16 %v1116, %v1114
        %v1183 = vpack.c.b16 %v1117, %v1115
        %v1184 = vpack.c.b16 %v1120, %v1118
        %v1185 = vpack.c.b16 %v1121, %v1119
        %1250 = vmatprep.subr.bf16.mxu0 %v1137
        %1251 = vmatpush1.bf16.msra.mxu0 %v1136
        %1252 = vmatprep.subr.bf16.mxu0 %v1135
        %1253 = vmatpush1.bf16.msra.mxu0 %v1134
        %1254 = vmatprep.subr.bf16.mxu0 %v1133
        %1255 = vmatpush1.bf16.msra.mxu0 %v1132
        %1256 = vmatprep.subr.bf16.mxu0 %v1131
        %1257 = vmatpush1.bf16.msra.mxu0 %v1130
        %1258 = vmatprep.subr.bf16.mxu0 %v1129
        %1259 = vmatpush1.bf16.msra.mxu0 %v1128
        %1260 = vmatprep.subr.bf16.mxu0 %v1127
        %1261 = vmatpush1.bf16.msra.mxu0 %v1126
        %1262 = vmatprep.subr.bf16.mxu0 %v1125
        %1263 = vmatpush1.bf16.msra.mxu0 %v1124
        %1264 = vmatprep.subr.bf16.mxu0 %v1123
        %1265 = vmatpush1.bf16.msra.mxu0 %v1122
        %1266 = vmatprep.subr.bf16.mxu0 %v1153
        %1267 = vmatpush2.bf16.msra.mxu0 %v1152
        %1268 = vmatprep.subr.bf16.mxu0 %v1151
        %1269 = vmatpush2.bf16.msra.mxu0 %v1150
        %1270 = vmatprep.subr.bf16.mxu0 %v1149
        %1271 = vmatpush2.bf16.msra.mxu0 %v1148
        %1272 = vmatprep.subr.bf16.mxu0 %v1147
        %1273 = vmatpush2.bf16.msra.mxu0 %v1146
        %1274 = vmatprep.subr.bf16.mxu0 %v1145
        %1275 = vmatpush2.bf16.msra.mxu0 %v1144
        %1276 = vmatprep.subr.bf16.mxu0 %v1143
        %1277 = vmatpush2.bf16.msra.mxu0 %v1142
        %1278 = vmatprep.subr.bf16.mxu0 %v1141
        %1279 = vmatpush2.bf16.msra.mxu0 %v1140
        %1280 = vmatprep.subr.bf16.mxu0 %v1139
        %1281 = vmatpush2.bf16.msra.mxu0 %v1138
        %1282 = vmatprep.mubr.bf16.mxu0 %v851
        %1283 = vmatmul.mubr.bf16.gmra.mxu0 %v850
        %v1284 = vpop.f32.mrf.mxu0
        %v1285 = vadd.f32 %v923, %v1284
        %v1286 = vpop.f32.mrf.mxu0
        %v1287 = vadd.f32 %v927, %v1286
        %v1288 = vpop.f32.mrf.mxu0
        %v1289 = vpop.f32.mrf.mxu0
        %1290 = vdwg.mxu0
        %1291 = vmatprep.subr.bf16.mxu0 %v1169
        %1292 = vmatpush1.bf16.msra.mxu0 %v1168
        %1293 = vmatprep.subr.bf16.mxu0 %v1167
        %1294 = vmatpush1.bf16.msra.mxu0 %v1166
        %1295 = vmatprep.subr.bf16.mxu0 %v1165
        %1296 = vmatpush1.bf16.msra.mxu0 %v1164
        %1297 = vmatprep.subr.bf16.mxu0 %v1163
        %1298 = vmatpush1.bf16.msra.mxu0 %v1162
        %1299 = vmatprep.subr.bf16.mxu0 %v1161
        %1300 = vmatpush1.bf16.msra.mxu0 %v1160
        %1301 = vmatprep.subr.bf16.mxu0 %v1159
        %1302 = vmatpush1.bf16.msra.mxu0 %v1158
        %1303 = vmatprep.subr.bf16.mxu0 %v1157
        %1304 = vmatpush1.bf16.msra.mxu0 %v1156
        %1305 = vmatprep.subr.bf16.mxu0 %v1155
        %1306 = vmatpush1.bf16.msra.mxu0 %v1154
        %1307 = vmatprep.subr.bf16.mxu0 %v1185
        %1308 = vmatpush2.bf16.msra.mxu0 %v1184
        %1309 = vmatprep.subr.bf16.mxu0 %v1183
        %1310 = vmatpush2.bf16.msra.mxu0 %v1182
        %1311 = vmatprep.subr.bf16.mxu0 %v1181
        %1312 = vmatpush2.bf16.msra.mxu0 %v1180
        %1313 = vmatprep.subr.bf16.mxu0 %v1179
        %1314 = vmatpush2.bf16.msra.mxu0 %v1178
        %1315 = vmatprep.subr.bf16.mxu0 %v1177
        %1316 = vmatpush2.bf16.msra.mxu0 %v1176
        %1317 = vmatprep.subr.bf16.mxu0 %v1175
        %1318 = vmatpush2.bf16.msra.mxu0 %v1174
        %1319 = vmatprep.subr.bf16.mxu0 %v1173
        %1320 = vmatpush2.bf16.msra.mxu0 %v1172
        %1321 = vmatprep.subr.bf16.mxu0 %v1171
        %1322 = vmatpush2.bf16.msra.mxu0 %v1170
        %1323 = vmatprep.mubr.bf16.mxu0 %v853
        %1324 = vmatmul.mubr.bf16.gmra.mxu0 %v852
        %v1325 = vpop.f32.mrf.mxu0
        %v1326 = vadd.f32 %v1285, %v1325
        %v1327 = vpop.f32.mrf.mxu0
        %v1328 = vadd.f32 %v1287, %v1327
        %v1329 = vpop.f32.mrf.mxu0
        %v1330 = vpop.f32.mrf.mxu0
        %1331 = vdwg.mxu0
        %v1332 = vadd.f32 %v1326, %v337
        %v1333 = vadd.f32 %v1328, %v338
        %v1334 = vld [vmem:[%s5] sm:$0x3]
        %v1335 = vld [vmem:[%s6] sm:$0x3]
        %v1336 = vadd.f32 %v1332, %v1333
        %1337 = vadd.xlane.f32.xlu0 %v1336
        %v1338 = vpop.xlane.xlu0 %1337
        %v1339 = vrcp.pop 256.0
        %v1340 = vmul.f32 %v1338, %v1339
        %v1341 = vsub.f32 %v1332, %v1340
        %v1342 = vsub.f32 %v1333, %v1340
        %v1343 = vmul.f32 %v1341, %v1341
        %v1344 = vmul.f32 %v1342, %v1342
        %v1345 = vadd.f32 %v1343, %v1344
        %1346 = vadd.xlane.f32.xlu0 %v1345
        %v1347 = vpop.xlane.xlu0 %1346
        %v1348 = vmul.f32 %v1347, %v1339
        %v1349 = vadd.f32 %v1348, 1e-05
        %v1350 = vrsqrt.pop %v1349
        %v1351 = vmul.f32 %v1341, %v1350
        %v1352 = vmul.f32 %v1342, %v1350
        %v1354 = vlaneseq
        %v1355 = vshrl.u32 %v1354, 7
        %v1356 = vsub.s32 0, %v1355
        %v1357 = vrot.slane %v1334, %v1356
        %v1358 = vlaneseq
        %v1359 = vshrl.u32 %v1358, 7
        %v1360 = vsub.s32 1, %v1359
        %v1361 = vrot.slane %v1334, %v1360
        %v1364 = vmul.f32 %v1351, %v1357
        %v1365 = vmul.f32 %v1352, %v1361
        %v1367 = vlaneseq
        %v1368 = vshrl.u32 %v1367, 7
        %v1369 = vsub.s32 0, %v1368
        %v1370 = vrot.slane %v1335, %v1369
        %v1371 = vlaneseq
        %v1372 = vshrl.u32 %v1371, 7
        %v1373 = vsub.s32 1, %v1372
        %v1374 = vrot.slane %v1335, %v1373
        %v1377 = vadd.f32 %v1364, %v1370
        %v1378 = vadd.f32 %v1365, %v1374
        %1379 = vst [vmem:[%s336] sm:$0xff] %v1377
        %1380 = vst [vmem:[%s336 + $0x8] sm:$0xff] %v1378
        %s1381 = sand.u32 %s186, 1
        %s1382 = scalar_lea.sflag [#allocation4], %s1381
        %s1383 = sand.u32 %s186, 1
        %s1384 = smul.addr %s1383, 16
        %s1385 = scalar_lea.vmem [#allocation10], %s1384
        // Predicated region
        $region65: #{tpu_custom_call.1} parent=47 // pred_check
          %p1386 = pneg %p196
        $region66: #{tpu_custom_call.1} parent=47 // pred_check_branch
          %1388 = sbr.rel (%p1386) target = $region68
        $region67: #{tpu_custom_call.1} parent=47 // pred_region
          %s1390 = ssub.s32 256, 256
          %1391 = vsyncadd %s1382, %s1390
          %s1392 = smul.addr %s26, 2
          %s1393 = smul.addr %s1392, 128
          %s1394 = scalar_lea.hbm %s7, %s1393
          %s1396 = sshll.u32 %s1385, 4
          %s1397 = int_to_ptr.vmem [resolvable:$true] %s1396
          %1399 = dma.vmem_to_hbm [thread:$0]  %s1397, 256, %s1394, %s1382
        $region68: #{tpu_custom_call.1} parent=47 // pred_fallthru
          _
      $region48: #{tpu_custom_call.1} parent=5 // pred_fallthru
        _
      %p1400 = scmp.le.s32.totalorder 2, %s21
      // Predicated region
      $region69: #{tpu_custom_call.1} parent=5 // pred_check
        %p1401 = pneg %p1400
      $region70: #{tpu_custom_call.1} parent=5 // pred_check_branch
        %1403 = sbr.rel (%p1401) target = $region72
      $region71: #{tpu_custom_call.1} parent=5 // pred_region
        %s1404 = ssub.s32 %s21, 2
        // Predicated region
        $region73: #{tpu_custom_call.1} parent=71 // pred_check
          %p1405 = pneg %p202
        $region74: #{tpu_custom_call.1} parent=71 // pred_check_branch
          %1407 = sbr.rel (%p1405) target = $region76
        $region75: #{tpu_custom_call.1} parent=71 // pred_region
          %s1408 = sand.u32 %s187, 1
          %s1409 = scalar_lea.sflag [#allocation4], %s1408
          %s1410 = sand.u32 %s187, 1
          %s1411 = smul.addr %s1410, 16
          %s1412 = scalar_lea.vmem [#allocation10], %s1411
          %1413 = dma.done %s1409, 256
        $region76: #{tpu_custom_call.1} parent=71 // pred_fallthru
          _
      $region72: #{tpu_custom_call.1} parent=5 // pred_fallthru
        _
    $region6: #{tpu_custom_call.1} parent=1 // loop_footer
      %s25 = sadd.s32 1, %s21
    $region7: #{tpu_custom_call.1} parent=1 // loop_footer_branch
      %20 = sbr.rel target = $region3
    $region8: #{tpu_custom_call.1} parent=1 // loop_exit
      _
    %1414 = vsyncpa [#allocation3], 1
    %s1415 = scalar_lea.sflag [#allocation3], 1
    %1416 = vsyncpa %s1415, 1
    %1417 = vsyncpa [#allocation6], 1
    %1418 = vsyncpa [#allocation9], 1
    %1419 = vsyncpa [#allocation4], 1
    %s1420 = scalar_lea.sflag [#allocation4], 1
    %1421 = vsyncpa %s1420, 1

</llo_original>
